<compile_context>
chip_gen: v7x
topology: tpu7x:2x2x1
jax: 0.10.0
libtpu: 0.0.40
codegen_flags: <defaults>
</compile_context>

<pallas_src>
import functools

import jax
import jax.numpy as jnp
from jax.experimental import pallas as pl
from jax.experimental.pallas import tpu as pltpu


def _round_up(a, b):
    return (a + b - 1) // b * b


def _wce_kernel(w_ref, x_ref, t_ref, num_out_ref, den_out_ref,
                num_acc, den_acc, *, num_classes, ignore_index,
                s_tile, grid_k, hw, mask_tail):
    k = pl.program_id(2)

    @pl.when(k == 0)
    def _():
        num_acc[...] = jnp.zeros_like(num_acc)
        den_acc[...] = jnp.zeros_like(den_acc)

    # One (s_tile, 128) slab per class: full sublane + lane occupancy, and the
    # class-axis max/sum below are plain element-wise VPU ops (no XLU).
    xs = [x_ref[0, c].astype(jnp.float32) for c in range(num_classes)]
    t = t_ref[0, 0]                                        # (s_tile, 128) int32

    if mask_tail:
        # The last pixel tile overhangs H*W (no wrapper-side pad): sanitize the
        # overhang logits before exp/log and zero its weight contribution.
        p = pl.program_id(1)
        tile_idx = p * grid_k + k
        pix = (tile_idx * (s_tile * 128)
               + jax.lax.broadcasted_iota(jnp.int32, (s_tile, 128), 0) * 128
               + jax.lax.broadcasted_iota(jnp.int32, (s_tile, 128), 1))
        valid = pix < hw
        xs = [jnp.where(valid, xc, 0.0) for xc in xs]

    # Numerically-stable log-sum-exp over the (small, static) class axis.
    m = xs[0]
    for c in range(1, num_classes):
        m = jnp.maximum(m, xs[c])
    se = jnp.exp(xs[0] - m)
    for c in range(1, num_classes):
        se = se + jnp.exp(xs[c] - m)
    lse = jnp.log(se) + m                                  # (s_tile, 128)

    # Gather target logit / target class weight with per-class selects.
    # Targets equal to ignore_index (skipped below) or any out-of-range value
    # (including overhang garbage) never match, so their weight stays 0 and
    # they contribute nothing -- no runtime ignore-compare needed.
    tgt_logit = jnp.zeros_like(m)
    w_t = jnp.zeros_like(m)
    for c in range(num_classes):
        if c == ignore_index:
            continue
        sel = t == c
        tgt_logit = jnp.where(sel, xs[c], tgt_logit)
        w_t = jnp.where(sel, w_ref[c], w_t)                # w_ref[c]: SMEM scalar

    if mask_tail:
        w_t = jnp.where(valid, w_t, 0.0)

    # Per-tile sublane reduction into tiny (1, 128) resident accumulators.
    num_acc[...] += jnp.sum(w_t * (lse - tgt_logit), axis=0, keepdims=True)
    den_acc[...] += jnp.sum(w_t, axis=0, keepdims=True)

    @pl.when(k == grid_k - 1)
    def _():
        num = jnp.sum(num_acc[...])
        den = jnp.sum(den_acc[...])
        # Write full (1,1,8,128) slabs (unmasked stores); wrapper reads [..,0,0].
        num_out_ref[...] = jnp.full(num_out_ref.shape, num, jnp.float32)
        den_out_ref[...] = jnp.full(den_out_ref.shape, den, jnp.float32)


def weighted_cross_entropy_loss(logits_nchw, target_nhw, weight,
                                ignore_index=-100, s_tile=None):
    """logits_nchw: (N, C, H, W) float; target_nhw: (N, H, W) int; weight: (C,)."""
    N, C, H, W = logits_nchw.shape
    HW = H * W
    itemsize = jnp.dtype(logits_nchw.dtype).itemsize

    # ---- pixel layout: (N,C,H*W) -> (N,C,S,128); free contiguous reshapes.
    HW128 = _round_up(HW, 128)
    x3 = logits_nchw.reshape(N, C, HW)
    t3 = target_nhw.astype(jnp.int32).reshape(N, 1, HW)
    if HW128 != HW:
        # Rare path (H*W not a multiple of 128): pad to the next lane multiple
        # only.  Pad targets with -1 (never matches any class).
        x3 = jnp.pad(x3, ((0, 0), (0, 0), (0, HW128 - HW)))
        t3 = jnp.pad(t3, ((0, 0), (0, 0), (0, HW128 - HW)), constant_values=-1)
    S = HW128 // 128
    x4 = x3.reshape(N, C, S, 128)
    t4 = t3.reshape(N, 1, S, 128)
    w1 = weight.astype(jnp.float32).reshape(C)

    # ---- generation-aware tile sizing (padding-correct VMEM accounting).
    try:
        vmem_cap = int(getattr(pltpu.get_tpu_info(), "vmem_capacity_bytes", 0)) \
            or (64 << 20)
    except Exception:
        vmem_cap = 64 << 20                      # conservative (v7x per-core)
    block_budget = min(int(0.40 * vmem_cap), 48 << 20)
    # Double-buffered logits (C slabs) + int32 targets, per 128-pixel row.
    bytes_per_srow = 2 * C * 128 * itemsize + 2 * 128 * 4
    if s_tile is None:
        s_tile = block_budget // bytes_per_srow
    s_tile = min(int(s_tile), 512)               # <= 65536 px / tile
    if s_tile >= S:
        s_tile = S                               # full-extent block (always legal)
    else:
        s_tile = max(8, (s_tile // 8) * 8)       # (8,128)-aligned block
    num_tiles = -(-S // s_tile)

    # Split pixel tiles across a second 'parallel' axis when the batch alone
    # cannot feed both v7x TensorCores.
    if N % 2 == 1 and num_tiles % 2 == 0 and num_tiles >= 2:
        P = 2
    else:
        P = 1
    K = num_tiles // P

    mask_tail = (num_tiles * s_tile * 128) != HW

    # Scoped-VMEM limit: blocks + generous estimate of f32 intermediates.
    interm = (C + 8) * s_tile * 128 * 4
    vmem_need = s_tile * bytes_per_srow + interm + (256 << 10)
    vmem_limit = max(vmem_need * 3 // 2, 16 << 20)
    vmem_limit = min(vmem_limit, int(0.85 * vmem_cap))
    vmem_limit = int(max(vmem_limit, vmem_need))

    kernel = functools.partial(
        _wce_kernel, num_classes=C, ignore_index=int(ignore_index),
        s_tile=s_tile, grid_k=K, hw=HW, mask_tail=mask_tail)

    cost = pl.CostEstimate(
        flops=int(6 * N * C * HW),
        transcendentals=int(N * HW * (C + 1)),
        bytes_accessed=int(N * C * HW * itemsize + N * HW * 4
                           + 2 * N * P * 8 * 128 * 4),
    )

    num_out, den_out = pl.pallas_call(
        kernel,
        out_shape=(
            jax.ShapeDtypeStruct((N, P, 8, 128), jnp.float32),
            jax.ShapeDtypeStruct((N, P, 8, 128), jnp.float32),
        ),
        grid_spec=pltpu.PrefetchScalarGridSpec(
            num_scalar_prefetch=0,
            grid=(N, P, K),
            in_specs=[
                pl.BlockSpec(memory_space=pltpu.MemorySpace.SMEM),      # weights (C,)
                pl.BlockSpec((1, C, s_tile, 128),
                             lambda n, p, k: (n, 0, p * K + k, 0)),     # logits
                pl.BlockSpec((1, 1, s_tile, 128),
                             lambda n, p, k: (n, 0, p * K + k, 0)),     # targets
            ],
            out_specs=(
                pl.BlockSpec((1, 1, 8, 128), lambda n, p, k: (n, p, 0, 0)),
                pl.BlockSpec((1, 1, 8, 128), lambda n, p, k: (n, p, 0, 0)),
            ),
            scratch_shapes=[
                pltpu.VMEM((1, 128), jnp.float32),   # per-lane numerator partial
                pltpu.VMEM((1, 128), jnp.float32),   # per-lane denominator partial
            ],
        ),
        compiler_params=pltpu.CompilerParams(
            dimension_semantics=("parallel", "parallel", "arbitrary"),
            vmem_limit_bytes=vmem_limit,
        ),
        cost_estimate=cost,
    )(w1, x4, t4)

    num_total = jnp.sum(num_out[:, :, 0, 0])
    den_total = jnp.sum(den_out[:, :, 0, 0])
    return num_total / den_total


def _reference_loss(logits_nchw, target_nhw, weight, ignore_index=-100):
    """Pure-JAX reference mirroring torch CrossEntropyLoss semantics."""
    N, C, H, W = logits_nchw.shape
    x = jnp.transpose(logits_nchw, (0, 2, 3, 1)).reshape(-1, C).astype(jnp.float32)
    t = target_nhw.reshape(-1).astype(jnp.int32)
    valid = t != ignore_index
    t_safe = jnp.where(valid, t, 0)
    logp = jax.nn.log_softmax(x, axis=-1)
    nll = -jnp.take_along_axis(logp, t_safe[:, None], axis=-1)[:, 0]
    w_t = weight.astype(jnp.float32)[t_safe]
    num = jnp.sum(jnp.where(valid, w_t * nll, 0.0))
    den = jnp.sum(jnp.where(valid, w_t, 0.0))
    return num / den


if __name__ == "__main__":
    key = jax.random.PRNGKey(0)
    N, C, H, W = 2, 4, 16, 16
    ignore_index = -100

    k1, k2, k3 = jax.random.split(key, 3)
    logits = jax.random.normal(k1, (N, C, H, W), dtype=jnp.float32)
    target = jax.random.randint(k2, (N, H, W), 0, C, dtype=jnp.int32)
    # sprinkle some ignored pixels to exercise ignore_index handling
    ignore_mask = jax.random.bernoulli(k3, 0.1, (N, H, W))
    target = jnp.where(ignore_mask, jnp.int32(ignore_index), target)

    # deterministic per-class weights (shape (C,), as in nn.CrossEntropyLoss(weight=...))
    weight = jnp.array([0.5, 1.0, 1.5, 2.0], dtype=jnp.float32)

    loss = weighted_cross_entropy_loss(logits, target, weight, ignore_index)
    loss = jax.block_until_ready(loss)

    ref = jax.block_until_ready(_reference_loss(logits, target, weight, ignore_index))
    assert jnp.allclose(loss, ref, rtol=1e-5, atol=1e-5), (loss, ref)

    print("KERNEL_OK")
</pallas_src>

<mosaic_0001>
module attributes {stable_mosaic.version = 11 : i64} {
  func.func @_wce_kernel(%arg0: i32, %arg1: i32, %arg2: i32, %arg3: memref<4xf32, #tpu.memory_space<smem>>, %arg4: memref<1x4x2x128xf32, #tpu.memory_space<vmem>>, %arg5: memref<1x1x2x128xi32, #tpu.memory_space<vmem>>, %arg6: memref<1x1x8x128xf32, #tpu.memory_space<vmem>>, %arg7: memref<1x1x8x128xf32, #tpu.memory_space<vmem>>, %arg8: memref<1x128xf32, #tpu.memory_space<vmem>>, %arg9: memref<1x128xf32, #tpu.memory_space<vmem>>) attributes {dimension_semantics = [#tpu.dimension_semantics<parallel>, #tpu.dimension_semantics<parallel>, #tpu.dimension_semantics<arbitrary>], iteration_bounds = array<i64: 2, 1, 1>, scalar_prefetch = 0 : i64, scratch_operands = 2 : i64, tpu.core_type = #tpu.core_type<tc>, window_params = [{transform_indices = @transform_0, window_bounds = array<i64: 4>}, {transform_indices = @transform_1, window_bounds = array<i64: 1, 4, 2, 128>}, {transform_indices = @transform_2, window_bounds = array<i64: 1, 1, 2, 128>}, {transform_indices = @transform_3, window_bounds = array<i64: 1, 1, 8, 128>}, {transform_indices = @transform_4, window_bounds = array<i64: 1, 1, 8, 128>}]} {
    %c0_i32 = arith.constant 0 : i32
    %0 = arith.cmpi eq, %arg2, %c0_i32 : i32
    %1 = arith.extui %0 : i1 to i32
    %c0_i32_0 = arith.constant 0 : i32
    %2 = arith.cmpi ne, %1, %c0_i32_0 : i32
    scf.if %2 {
      %cst_35 = arith.constant 0.000000e+00 : f32
      %70 = vector.broadcast %cst_35 : f32 to vector<1x128xf32>
      %c0_36 = arith.constant 0 : index
      %c0_37 = arith.constant 0 : index
      %71 = vector.load %arg8[%c0_36, %c0_37] : memref<1x128xf32, #tpu.memory_space<vmem>>, vector<1x128xf32>
      tpu.vector_store %arg8[%c0_36, %c0_37], %70 {strides = array<i32>} : memref<1x128xf32, #tpu.memory_space<vmem>>, vector<1x128xf32>,
      %cst_38 = arith.constant 0.000000e+00 : f32
      %72 = vector.broadcast %cst_38 : f32 to vector<1x128xf32>
      %c0_39 = arith.constant 0 : index
      %c0_40 = arith.constant 0 : index
      %73 = vector.load %arg9[%c0_39, %c0_40] : memref<1x128xf32, #tpu.memory_space<vmem>>, vector<1x128xf32>
      tpu.vector_store %arg9[%c0_39, %c0_40], %72 {strides = array<i32>} : memref<1x128xf32, #tpu.memory_space<vmem>>, vector<1x128xf32>,
    } else {
    }
    %c0 = arith.constant 0 : index
    %c0_1 = arith.constant 0 : index
    %c0_2 = arith.constant 0 : index
    %c0_3 = arith.constant 0 : index
    %3 = vector.load %arg4[%c0, %c0_1, %c0_2, %c0_3] : memref<1x4x2x128xf32, #tpu.memory_space<vmem>>, vector<1x1x2x128xf32>
    %4 = vector.shape_cast %3 : vector<1x1x2x128xf32> to vector<2x128xf32>
    %c0_4 = arith.constant 0 : index
    %c1 = arith.constant 1 : index
    %c0_5 = arith.constant 0 : index
    %c0_6 = arith.constant 0 : index
    %5 = vector.load %arg4[%c0_4, %c1, %c0_5, %c0_6] : memref<1x4x2x128xf32, #tpu.memory_space<vmem>>, vector<1x1x2x128xf32>
    %6 = vector.shape_cast %5 : vector<1x1x2x128xf32> to vector<2x128xf32>
    %c0_7 = arith.constant 0 : index
    %c2 = arith.constant 2 : index
    %c0_8 = arith.constant 0 : index
    %c0_9 = arith.constant 0 : index
    %7 = vector.load %arg4[%c0_7, %c2, %c0_8, %c0_9] : memref<1x4x2x128xf32, #tpu.memory_space<vmem>>, vector<1x1x2x128xf32>
    %8 = vector.shape_cast %7 : vector<1x1x2x128xf32> to vector<2x128xf32>
    %c0_10 = arith.constant 0 : index
    %c3 = arith.constant 3 : index
    %c0_11 = arith.constant 0 : index
    %c0_12 = arith.constant 0 : index
    %9 = vector.load %arg4[%c0_10, %c3, %c0_11, %c0_12] : memref<1x4x2x128xf32, #tpu.memory_space<vmem>>, vector<1x1x2x128xf32>
    %10 = vector.shape_cast %9 : vector<1x1x2x128xf32> to vector<2x128xf32>
    %c0_13 = arith.constant 0 : index
    %c0_14 = arith.constant 0 : index
    %c0_15 = arith.constant 0 : index
    %c0_16 = arith.constant 0 : index
    %11 = vector.load %arg5[%c0_13, %c0_14, %c0_15, %c0_16] : memref<1x1x2x128xi32, #tpu.memory_space<vmem>>, vector<1x1x2x128xi32>
    %12 = vector.shape_cast %11 : vector<1x1x2x128xi32> to vector<2x128xi32>
    %13 = arith.maximumf %4, %6 : vector<2x128xf32>
    %14 = arith.maximumf %13, %8 : vector<2x128xf32>
    %15 = arith.maximumf %14, %10 : vector<2x128xf32>
    %16 = arith.subf %4, %15 : vector<2x128xf32>
    %17 = math.exp %16 : vector<2x128xf32>
    %18 = arith.subf %6, %15 : vector<2x128xf32>
    %19 = math.exp %18 : vector<2x128xf32>
    %20 = arith.addf %17, %19 : vector<2x128xf32>
    %21 = arith.subf %8, %15 : vector<2x128xf32>
    %22 = math.exp %21 : vector<2x128xf32>
    %23 = arith.addf %20, %22 : vector<2x128xf32>
    %24 = arith.subf %10, %15 : vector<2x128xf32>
    %25 = math.exp %24 : vector<2x128xf32>
    %26 = arith.addf %23, %25 : vector<2x128xf32>
    %27 = math.log %26 : vector<2x128xf32>
    %28 = arith.addf %27, %15 : vector<2x128xf32>
    %cst = arith.constant 0.000000e+00 : f32
    %29 = vector.broadcast %cst : f32 to vector<2x128xf32>
    %cst_17 = arith.constant 0.000000e+00 : f32
    %30 = vector.broadcast %cst_17 : f32 to vector<2x128xf32>
    %c0_i32_18 = arith.constant 0 : i32
    %31 = vector.broadcast %c0_i32_18 : i32 to vector<2x128xi32>
    %32 = arith.cmpi eq, %12, %31 : vector<2x128xi32>
    %33 = arith.select %32, %4, %29 : vector<2x128xi1>, vector<2x128xf32>
    %c0_19 = arith.constant 0 : index
    %34 = memref.load %arg3[%c0_19] : memref<4xf32, #tpu.memory_space<smem>>
    %35 = vector.broadcast %34 : f32 to vector<2x128xf32>
    %36 = arith.select %32, %35, %30 : vector<2x128xi1>, vector<2x128xf32>
    %c1_i32 = arith.constant 1 : i32
    %37 = vector.broadcast %c1_i32 : i32 to vector<2x128xi32>
    %38 = arith.cmpi eq, %12, %37 : vector<2x128xi32>
    %39 = arith.select %38, %6, %33 : vector<2x128xi1>, vector<2x128xf32>
    %c1_20 = arith.constant 1 : index
    %40 = memref.load %arg3[%c1_20] : memref<4xf32, #tpu.memory_space<smem>>
    %41 = vector.broadcast %40 : f32 to vector<2x128xf32>
    %42 = arith.select %38, %41, %36 : vector<2x128xi1>, vector<2x128xf32>
    %c2_i32 = arith.constant 2 : i32
    %43 = vector.broadcast %c2_i32 : i32 to vector<2x128xi32>
    %44 = arith.cmpi eq, %12, %43 : vector<2x128xi32>
    %45 = arith.select %44, %8, %39 : vector<2x128xi1>, vector<2x128xf32>
    %c2_21 = arith.constant 2 : index
    %46 = memref.load %arg3[%c2_21] : memref<4xf32, #tpu.memory_space<smem>>
    %47 = vector.broadcast %46 : f32 to vector<2x128xf32>
    %48 = arith.select %44, %47, %42 : vector<2x128xi1>, vector<2x128xf32>
    %c3_i32 = arith.constant 3 : i32
    %49 = vector.broadcast %c3_i32 : i32 to vector<2x128xi32>
    %50 = arith.cmpi eq, %12, %49 : vector<2x128xi32>
    %51 = arith.select %50, %10, %45 : vector<2x128xi1>, vector<2x128xf32>
    %c3_22 = arith.constant 3 : index
    %52 = memref.load %arg3[%c3_22] : memref<4xf32, #tpu.memory_space<smem>>
    %53 = vector.broadcast %52 : f32 to vector<2x128xf32>
    %54 = arith.select %50, %53, %48 : vector<2x128xi1>, vector<2x128xf32>
    %c0_23 = arith.constant 0 : index
    %c0_24 = arith.constant 0 : index
    %55 = vector.load %arg8[%c0_23, %c0_24] : memref<1x128xf32, #tpu.memory_space<vmem>>, vector<1x128xf32>
    %56 = arith.subf %28, %51 : vector<2x128xf32>
    %57 = arith.mulf %54, %56 : vector<2x128xf32>
    %cst_25 = arith.constant dense<0.000000e+00> : vector<128xf32>
    %58 = vector.multi_reduction <add>, %57, %cst_25 [0] : vector<2x128xf32> to vector<128xf32>
    %59 = vector.shape_cast %58 : vector<128xf32> to vector<1x128xf32>
    %60 = arith.addf %55, %59 : vector<1x128xf32>
    %c0_26 = arith.constant 0 : index
    %c0_27 = arith.constant 0 : index
    %61 = vector.load %arg8[%c0_26, %c0_27] : memref<1x128xf32, #tpu.memory_space<vmem>>, vector<1x128xf32>
    tpu.vector_store %arg8[%c0_26, %c0_27], %60 {strides = array<i32>} : memref<1x128xf32, #tpu.memory_space<vmem>>, vector<1x128xf32>,
    %c0_28 = arith.constant 0 : index
    %c0_29 = arith.constant 0 : index
    %62 = vector.load %arg9[%c0_28, %c0_29] : memref<1x128xf32, #tpu.memory_space<vmem>>, vector<1x128xf32>
    %cst_30 = arith.constant dense<0.000000e+00> : vector<128xf32>
    %63 = vector.multi_reduction <add>, %54, %cst_30 [0] : vector<2x128xf32> to vector<128xf32>
    %64 = vector.shape_cast %63 : vector<128xf32> to vector<1x128xf32>
    %65 = arith.addf %62, %64 : vector<1x128xf32>
    %c0_31 = arith.constant 0 : index
    %c0_32 = arith.constant 0 : index
    %66 = vector.load %arg9[%c0_31, %c0_32] : memref<1x128xf32, #tpu.memory_space<vmem>>, vector<1x128xf32>
    tpu.vector_store %arg9[%c0_31, %c0_32], %65 {strides = array<i32>} : memref<1x128xf32, #tpu.memory_space<vmem>>, vector<1x128xf32>,
    %c0_i32_33 = arith.constant 0 : i32
    %67 = arith.cmpi eq, %arg2, %c0_i32_33 : i32
    %68 = arith.extui %67 : i1 to i32
    %c0_i32_34 = arith.constant 0 : i32
    %69 = arith.cmpi ne, %68, %c0_i32_34 : i32
    scf.if %69 {
      %c0_35 = arith.constant 0 : index
      %c0_36 = arith.constant 0 : index
      %70 = vector.load %arg8[%c0_35, %c0_36] : memref<1x128xf32, #tpu.memory_space<vmem>>, vector<1x128xf32>
      %71 = vector.shape_cast %70 : vector<1x128xf32> to vector<1x1x128xf32>
      %cst_37 = arith.constant dense<0.000000e+00> : vector<1xf32>
      %72 = vector.multi_reduction <add>, %71, %cst_37 [1, 2] : vector<1x1x128xf32> to vector<1xf32>
      %73 = vector.shape_cast %72 : vector<1xf32> to vector<1x1x1xf32>
      %74 = vector.extract %73[0, 0, 0] : f32 from vector<1x1x1xf32>
      %c0_38 = arith.constant 0 : index
      %c0_39 = arith.constant 0 : index
      %75 = vector.load %arg9[%c0_38, %c0_39] : memref<1x128xf32, #tpu.memory_space<vmem>>, vector<1x128xf32>
      %76 = vector.shape_cast %75 : vector<1x128xf32> to vector<1x1x128xf32>
      %cst_40 = arith.constant dense<0.000000e+00> : vector<1xf32>
      %77 = vector.multi_reduction <add>, %76, %cst_40 [1, 2] : vector<1x1x128xf32> to vector<1xf32>
      %78 = vector.shape_cast %77 : vector<1xf32> to vector<1x1x1xf32>
      %79 = vector.extract %78[0, 0, 0] : f32 from vector<1x1x1xf32>
      %80 = vector.broadcast %74 : f32 to vector<1x1x8x128xf32>
      %c0_41 = arith.constant 0 : index
      %c0_42 = arith.constant 0 : index
      %c0_43 = arith.constant 0 : index
      %c0_44 = arith.constant 0 : index
      %81 = vector.load %arg6[%c0_41, %c0_42, %c0_43, %c0_44] : memref<1x1x8x128xf32, #tpu.memory_space<vmem>>, vector<1x1x8x128xf32>
      tpu.vector_store %arg6[%c0_41, %c0_42, %c0_43, %c0_44], %80 {strides = array<i32>} : memref<1x1x8x128xf32, #tpu.memory_space<vmem>>, vector<1x1x8x128xf32>,
      %82 = vector.broadcast %79 : f32 to vector<1x1x8x128xf32>
      %c0_45 = arith.constant 0 : index
      %c0_46 = arith.constant 0 : index
      %c0_47 = arith.constant 0 : index
      %c0_48 = arith.constant 0 : index
      %83 = vector.load %arg7[%c0_45, %c0_46, %c0_47, %c0_48] : memref<1x1x8x128xf32, #tpu.memory_space<vmem>>, vector<1x1x8x128xf32>
      tpu.vector_store %arg7[%c0_45, %c0_46, %c0_47, %c0_48], %82 {strides = array<i32>} : memref<1x1x8x128xf32, #tpu.memory_space<vmem>>, vector<1x1x8x128xf32>,
    } else {
    }
    return
  }
  func.func @transform_0(%arg0: i32, %arg1: i32, %arg2: i32) -> i32 {
    %c0_i32 = arith.constant 0 : i32
    %c0_i32_0 = arith.constant 0 : i32
    return %c0_i32 : i32
  }
  func.func @transform_1(%arg0: i32, %arg1: i32, %arg2: i32) -> (i32, i32, i32, i32) {
    %c1_i32 = arith.constant 1 : i32
    %0 = arith.muli %arg1, %c1_i32 : i32
    %1 = arith.addi %0, %arg2 : i32
    %c0_i32 = arith.constant 0 : i32
    %c0_i32_0 = arith.constant 0 : i32
    %c0_i32_1 = arith.constant 0 : i32
    return %arg0, %c0_i32, %1, %c0_i32_0 : i32, i32, i32, i32
  }
  func.func @transform_2(%arg0: i32, %arg1: i32, %arg2: i32) -> (i32, i32, i32, i32) {
    %c1_i32 = arith.constant 1 : i32
    %0 = arith.muli %arg1, %c1_i32 : i32
    %1 = arith.addi %0, %arg2 : i32
    %c0_i32 = arith.constant 0 : i32
    %c0_i32_0 = arith.constant 0 : i32
    %c0_i32_1 = arith.constant 0 : i32
    return %arg0, %c0_i32, %1, %c0_i32_0 : i32, i32, i32, i32
  }
  func.func @transform_3(%arg0: i32, %arg1: i32, %arg2: i32) -> (i32, i32, i32, i32) {
    %c0_i32 = arith.constant 0 : i32
    %c0_i32_0 = arith.constant 0 : i32
    %c0_i32_1 = arith.constant 0 : i32
    return %arg0, %arg1, %c0_i32, %c0_i32_0 : i32, i32, i32, i32
  }
  func.func @transform_4(%arg0: i32, %arg1: i32, %arg2: i32) -> (i32, i32, i32, i32) {
    %c0_i32 = arith.constant 0 : i32
    %c0_i32_0 = arith.constant 0 : i32
    %c0_i32_1 = arith.constant 0 : i32
    return %arg0, %arg1, %c0_i32, %c0_i32_0 : i32, i32, i32, i32
  }
}

</mosaic_0001>

<llo_original>
// kernel: tpu_custom_call.1
$region0: #{tpu_custom_call.1}
  #allocation0 [shape = 'u32[]', space=smem, size = 0x4, offset = 0x4, fixed_abs, tag = 'smem constant byte address 0x4 - core index']
  #allocation1 [shape = 'u32[144,128]{1,0:T(1,128)}', space=vmem, size = 0x12000, scoped, tag = 'internal scratch']
  #allocation2 [shape = 'f32[1,128]{1,0:T(1,128)}', space=vmem, size = 0x200, scoped, tag = 'scratch operand']
  #allocation3 [shape = 'f32[1,128]{1,0:T(1,128)}', space=vmem, size = 0x200, scoped, tag = 'scratch operand']
  %s0 = inlined_call_operand.hbm [shape: f32[4], index: 0, kind: input, shape index: {}]
  %s1 = inlined_call_operand.hbm [shape: f32[2,4,2,128], index: 1, kind: input, shape index: {}]
  %s2 = inlined_call_operand.vmem [shape: s32[2,1,2,128], index: 2, kind: input, shape index: {}]
  %s3 = inlined_call_operand.hbm [shape: f32[2,1,8,128], index: 3, kind: output, shape index: {0}]
  %s4 = inlined_call_operand.hbm [shape: f32[2,1,8,128], index: 4, kind: output, shape index: {1}]
  %5 = xla_tuple %s3, %s4
  %s6 = sld [smem:[#allocation0]]
  $region69: #{tpu_custom_call.1} parent=0
    _
  %s8 = ssub.s32 1, %s6
  %s9 = scalar_select 0, %s8, %s6
  $region1: #{tpu_custom_call.1} parent=0
    #allocation4 [shape = 'u8[512]{0}', space=smem, size = 0x200, scoped, tag = 'input window, operand 0, single buffered']
    #allocation5 [shape = 's32[2]{0}', space=sflag, size = 0x8, scoped, tag = 'scoped memory for tpu_custom_call.1']
    #allocation6 [shape = 's32[2]{0}', space=sflag, size = 0x8, scoped, tag = 'scoped memory for tpu_custom_call.1']
    #allocation7 [shape = 's32[2]{0}', space=sflag, size = 0x8, scoped, tag = 'scoped memory for tpu_custom_call.1']
    #allocation8 [shape = 'u8[8192]{0}', space=vmem, size = 0x2000, scoped, tag = 'input window, operand 1']
    #allocation9 [shape = 'u8[8192]{0}', space=vmem, size = 0x2000, scoped, tag = 'output window, operand 0']
    #allocation10 [shape = 'u8[8192]{0}', space=vmem, size = 0x2000, scoped, tag = 'output window, operand 1']
    #allocation11 [shape = 's32[2]{0}', space=sflag, size = 0x8, scoped, tag = 'scoped memory for tpu_custom_call.1']
    %10 = vsyncpa [#allocation7], 0
    %11 = vsyncpa [#allocation5], 0
    %s12 = scalar_lea.sflag [#allocation5], 1
    %13 = vsyncpa %s12, 0
    %14 = vsyncpa [#allocation6], 0
    %s15 = scalar_lea.sflag [#allocation6], 1
    %16 = vsyncpa %s15, 0
    %17 = vsyncpa [#allocation11], 0
    %s18 = scalar_lea.sflag [#allocation11], 1
    %19 = vsyncpa %s18, 0
    loop: start=0, step=1, limit=4
    $region2: #{tpu_custom_call.1} parent=1 // loop_pre_header
      _
    $region3: #{tpu_custom_call.1} parent=1 // loop_header
      %s21 = sphi 0, %s25
      %p22 = scmp.ge.s32.totalorder %s21, 4
      %s28 = sphi 0, %s47
      %s29 = sphi 0, %s43
      %s30 = sphi 0, %s39
      %s31 = sphi 0, %s28
      %s32 = sphi 0, %s29
      %s33 = sphi 0, %s30
      %s34 = sphi 0, %s31
      %s35 = sphi 0, %s32
      %s36 = sphi 0, %s33
      %s48 = sphi 0, %s48
      %s50 = sphi 0, %s48
      %s51 = sphi 0, %s50
      %s65 = sphi 0, %s51
      %s75 = sphi 0, %s77
      %s78 = sphi 0, %s75
      %s79 = sphi 0, %s78
      %s95 = sphi 0, %s79
      %s105 = sphi 0, %s107
      %s108 = sphi 0, %s105
      %s109 = sphi 0, %s108
      %s125 = sphi 0, %s109
      %s133 = sphi 0, %s135
      %s136 = sphi 0, %s133
      %s137 = sphi 0, %s136
      %s153 = sphi 0, %s137
      %s161 = sphi 0, %s163
      %s164 = sphi 0, %s161
      %s165 = sphi 0, %s164
      %s181 = sphi 0, %s165
    $region4: #{tpu_custom_call.1} parent=1 // loop_header_branch
      %24 = sbr.rel (%p22) target = $region8
    $region5: #{tpu_custom_call.1} parent=1 // loop_body
      %s26 = ssub.s32 %s21, 1
      %s27 = ssub.s32 %s21, 2
      %s37 = sadd.s32 1, %s30
      %p38 = scmp.ge.s32.totalorder %s37, 1
      %s39 = scalar_select %p38, 0, %s37
      %s40 = sadd.s32 1, %s29
      %s41 = scalar_select %p38, %s40, %s29
      %p42 = scmp.ge.s32.totalorder %s41, 1
      %s43 = scalar_select %p42, 0, %s41
      %s44 = sadd.s32 1, %s28
      %s45 = scalar_select %p42, %s44, %s28
      %p46 = scmp.ge.s32.totalorder %s45, 2
      %s47 = scalar_select %p46, 0, %s45
      %s49 = sadd.s32 %s48, 1
      %p52 = scmp.eq.s32.totalorder %s21, 1
      %p53 = scmp.ne.s32.totalorder %s48, %s50
      %p54 = scmp.eq.s32.totalorder %s21, 0
      %p55 = por %p53, %p54
      %p56 = scmp.ne.s32.totalorder %s48, %s50
      %p57 = scmp.eq.s32.totalorder %s26, 1
      %p58 = por %p56, %p57
      %p59 = scmp.ne.s32.totalorder %s50, %s51
      %p60 = scmp.eq.s32.totalorder %s26, 0
      %p61 = por %p59, %p60
      %p62 = scmp.ne.s32.totalorder %s50, %s51
      %p63 = scmp.eq.s32.totalorder %s27, 1
      %p64 = por %p62, %p63
      %p66 = scmp.ne.s32.totalorder %s51, %s65
      %p67 = scmp.eq.s32.totalorder %s27, 0
      %p68 = por %p66, %p67
      %s69 = sadd.s32 %s29, %s30
      %s70 = sadd.s32 %s43, %s39
      %s71 = ssub.s32 %s28, %s47
      %s72 = ssub.s32 %s69, %s70
      %s73 = sor.u32 %s71, %s72
      %p74 = scmp.eq.s32.totalorder %s73, 0
      %s76 = sadd.s32 %s75, 1
      %s77 = scalar_select %p74, %s75, %s76
      %p80 = pneg %p74
      %p81 = scmp.eq.s32.totalorder %s21, 1
      %p82 = por %p80, %p81
      %p83 = scmp.ne.s32.totalorder %s75, %s78
      %p84 = scmp.eq.s32.totalorder %s21, 0
      %p85 = por %p83, %p84
      %p86 = scmp.ne.s32.totalorder %s75, %s78
      %p87 = scmp.eq.s32.totalorder %s26, 1
      %p88 = por %p86, %p87
      %p89 = scmp.ne.s32.totalorder %s78, %s79
      %p90 = scmp.eq.s32.totalorder %s26, 0
      %p91 = por %p89, %p90
      %p92 = scmp.ne.s32.totalorder %s78, %s79
      %p93 = scmp.eq.s32.totalorder %s27, 1
      %p94 = por %p92, %p93
      %p96 = scmp.ne.s32.totalorder %s79, %s95
      %p97 = scmp.eq.s32.totalorder %s27, 0
      %p98 = por %p96, %p97
      %s99 = sadd.s32 %s29, %s30
      %s100 = sadd.s32 %s43, %s39
      %s101 = ssub.s32 %s28, %s47
      %s102 = ssub.s32 %s99, %s100
      %s103 = sor.u32 %s101, %s102
      %p104 = scmp.eq.s32.totalorder %s103, 0
      %s106 = sadd.s32 %s105, 1
      %s107 = scalar_select %p104, %s105, %s106
      %p110 = pneg %p104
      %p111 = scmp.eq.s32.totalorder %s21, 1
      %p112 = por %p110, %p111
      %p113 = scmp.ne.s32.totalorder %s105, %s108
      %p114 = scmp.eq.s32.totalorder %s21, 0
      %p115 = por %p113, %p114
      %p116 = scmp.ne.s32.totalorder %s105, %s108
      %p117 = scmp.eq.s32.totalorder %s26, 1
      %p118 = por %p116, %p117
      %p119 = scmp.ne.s32.totalorder %s108, %s109
      %p120 = scmp.eq.s32.totalorder %s26, 0
      %p121 = por %p119, %p120
      %p122 = scmp.ne.s32.totalorder %s108, %s109
      %p123 = scmp.eq.s32.totalorder %s27, 1
      %p124 = por %p122, %p123
      %p126 = scmp.ne.s32.totalorder %s109, %s125
      %p127 = scmp.eq.s32.totalorder %s27, 0
      %p128 = por %p126, %p127
      %s129 = ssub.s32 %s28, %s47
      %s130 = ssub.s32 %s29, %s43
      %s131 = sor.u32 %s129, %s130
      %p132 = scmp.eq.s32.totalorder %s131, 0
      %s134 = sadd.s32 %s133, 1
      %s135 = scalar_select %p132, %s133, %s134
      %p138 = pneg %p132
      %p139 = scmp.eq.s32.totalorder %s21, 1
      %p140 = por %p138, %p139
      %p141 = scmp.ne.s32.totalorder %s133, %s136
      %p142 = scmp.eq.s32.totalorder %s21, 0
      %p143 = por %p141, %p142
      %p144 = scmp.ne.s32.totalorder %s133, %s136
      %p145 = scmp.eq.s32.totalorder %s26, 1
      %p146 = por %p144, %p145
      %p147 = scmp.ne.s32.totalorder %s136, %s137
      %p148 = scmp.eq.s32.totalorder %s26, 0
      %p149 = por %p147, %p148
      %p150 = scmp.ne.s32.totalorder %s136, %s137
      %p151 = scmp.eq.s32.totalorder %s27, 1
      %p152 = por %p150, %p151
      %p154 = scmp.ne.s32.totalorder %s137, %s153
      %p155 = scmp.eq.s32.totalorder %s27, 0
      %p156 = por %p154, %p155
      %s157 = ssub.s32 %s28, %s47
      %s158 = ssub.s32 %s29, %s43
      %s159 = sor.u32 %s157, %s158
      %p160 = scmp.eq.s32.totalorder %s159, 0
      %s162 = sadd.s32 %s161, 1
      %s163 = scalar_select %p160, %s161, %s162
      %p166 = pneg %p160
      %p167 = scmp.eq.s32.totalorder %s21, 1
      %p168 = por %p166, %p167
      %p169 = scmp.ne.s32.totalorder %s161, %s164
      %p170 = scmp.eq.s32.totalorder %s21, 0
      %p171 = por %p169, %p170
      %p172 = scmp.ne.s32.totalorder %s161, %s164
      %p173 = scmp.eq.s32.totalorder %s26, 1
      %p174 = por %p172, %p173
      %p175 = scmp.ne.s32.totalorder %s164, %s165
      %p176 = scmp.eq.s32.totalorder %s26, 0
      %p177 = por %p175, %p176
      %p178 = scmp.ne.s32.totalorder %s164, %s165
      %p179 = scmp.eq.s32.totalorder %s27, 1
      %p180 = por %p178, %p179
      %p182 = scmp.ne.s32.totalorder %s165, %s181
      %p183 = scmp.eq.s32.totalorder %s27, 0
      %p184 = por %p182, %p183
      %p185 = scmp.le.s32.totalorder 1, %s21
      %p186 = scmp.lt.s32.totalorder %s21, 3
      %p187 = pnand %p185, %p186
      %p188 = pneg %p187
      // Predicated region
      $region9: #{tpu_custom_call.1} parent=5 // pred_check
        _
      $region10: #{tpu_custom_call.1} parent=5 // pred_check_branch
        %190 = sbr.rel (%p187) target = $region12
      $region11: #{tpu_custom_call.1} parent=5 // pred_region
        %s191 = ssub.s32 %s21, 1
        // Predicated region
        $region13: #{tpu_custom_call.1} parent=11 // pred_check
          %p192 = pneg %p61
        $region14: #{tpu_custom_call.1} parent=11 // pred_check_branch
          %194 = sbr.rel (%p192) target = $region16
        $region15: #{tpu_custom_call.1} parent=11 // pred_region
          %s196 = ssub.s32 16, 16
          %197 = vsyncadd [#allocation7], %s196
          %200 = dma.hbm_to_smem %s0, 16, [#allocation4], [#allocation7]
        $region16: #{tpu_custom_call.1} parent=11 // pred_fallthru
          _
      $region12: #{tpu_custom_call.1} parent=5 // pred_fallthru
        _
      %p201 = scmp.lt.s32.totalorder %s21, 2
      // Predicated region
      $region17: #{tpu_custom_call.1} parent=5 // pred_check
        %p202 = pneg %p201
      $region18: #{tpu_custom_call.1} parent=5 // pred_check_branch
        %204 = sbr.rel (%p202) target = $region20
      $region19: #{tpu_custom_call.1} parent=5 // pred_region
        // Predicated region
        $region21: #{tpu_custom_call.1} parent=19 // pred_check
          %p205 = pneg %p85
        $region22: #{tpu_custom_call.1} parent=19 // pred_check_branch
          %207 = sbr.rel (%p205) target = $region24
        $region23: #{tpu_custom_call.1} parent=19 // pred_region
          %s208 = sand.u32 %s75, 1
          %s209 = scalar_lea.sflag [#allocation5], %s208
          %s210 = sand.u32 %s75, 1
          %s211 = smul.addr %s210, 8
          %s212 = scalar_lea.vmem [#allocation8], %s211
          %s213 = sadd.s32 %s29, %s30
          %s215 = ssub.s32 128, 128
          %216 = vsyncadd %s209, %s215
          %s217 = smul.addr %s28, 4
          %s218 = sadd.s32 %s213, %s217
          %s219 = smul.addr %s218, 32
          %s220 = scalar_lea.hbm %s1, %s219
          %s221 = sshll.u32 %s212, 4
          %s222 = int_to_ptr.vmem [resolvable:$true] %s221
          %227 = dma.hbm_to_vmem [thread:$0]  %s220, 128, %s222, %s209, 32, 32, 2
        $region24: #{tpu_custom_call.1} parent=19 // pred_fallthru
          _
        // Predicated region
        $region25: #{tpu_custom_call.1} parent=19 // pred_check
          %p228 = pneg %p115
        $region26: #{tpu_custom_call.1} parent=19 // pred_check_branch
          %230 = sbr.rel (%p228) target = $region28
        $region27: #{tpu_custom_call.1} parent=19 // pred_region
          %s231 = sadd.s32 %s29, %s30
          %p232 = scmp.lt.s32.totalorder %s28, 1
          %s233 = scalar_select %p232, %s28, 1
          %p234 = scmp.lt.s32.totalorder %s231, 0
          %s235 = scalar_select %p234, %s231, 0
          %s236 = sadd.s32 %s235, %s233
          %s237 = smul.addr %s236, 2
          %s238 = scalar_lea.vmem %s2, %s237
          %s239 = sadd.s32 %s29, %s30
        $region28: #{tpu_custom_call.1} parent=19 // pred_fallthru
          _
      $region20: #{tpu_custom_call.1} parent=5 // pred_fallthru
        _
      %p240 = scmp.le.s32.totalorder 1, %s21
      %p241 = scmp.lt.s32.totalorder %s21, 3
      %p242 = pnand %p240, %p241
      %p243 = pneg %p242
      // Predicated region
      $region29: #{tpu_custom_call.1} parent=5 // pred_check
        _
      $region30: #{tpu_custom_call.1} parent=5 // pred_check_branch
        %245 = sbr.rel (%p242) target = $region32
      $region31: #{tpu_custom_call.1} parent=5 // pred_region
        %s246 = ssub.s32 %s21, 1
        // Predicated region
        $region33: #{tpu_custom_call.1} parent=31 // pred_check
          %p247 = pneg %p61
        $region34: #{tpu_custom_call.1} parent=31 // pred_check_branch
          %249 = sbr.rel (%p247) target = $region36
        $region35: #{tpu_custom_call.1} parent=31 // pred_region
          %250 = dma.done [#allocation7], 16
        $region36: #{tpu_custom_call.1} parent=31 // pred_fallthru
          _
        %s251 = sand.u32 %s78, 1
        %s252 = scalar_lea.sflag [#allocation5], %s251
        %s253 = sand.u32 %s78, 1
        %s254 = smul.addr %s253, 8
        %s255 = scalar_lea.vmem [#allocation8], %s254
        // Predicated region
        $region37: #{tpu_custom_call.1} parent=31 // pred_check
          %p256 = pneg %p91
        $region38: #{tpu_custom_call.1} parent=31 // pred_check_branch
          %258 = sbr.rel (%p256) target = $region40
        $region39: #{tpu_custom_call.1} parent=31 // pred_region
          %259 = dma.done %s252, 128
        $region40: #{tpu_custom_call.1} parent=31 // pred_fallthru
          _
        %260 = sfence
        %p261 = pneg %p61
        %p262 = pneg %p58
        %s263 = sand.u32 %s78, 1
        %s264 = scalar_lea.sflag [#allocation5], %s263
        %s265 = sand.u32 %s78, 1
        %s266 = smul.addr %s265, 8
        %s267 = scalar_lea.vmem [#allocation8], %s266
        %p268 = pneg %p91
        %p269 = pneg %p88
        %s270 = sadd.s32 %s32, %s33
        %p271 = scmp.lt.s32.totalorder %s31, 1
        %s272 = scalar_select %p271, %s31, 1
        %p273 = scmp.lt.s32.totalorder %s270, 0
        %s274 = scalar_select %p273, %s270, 0
        %s275 = sadd.s32 %s274, %s272
        %s276 = smul.addr %s275, 2
        %s277 = scalar_lea.vmem %s2, %s276
        %p278 = pneg %p121
        %p279 = pneg %p118
        %p280 = pneg %p149
        %p281 = pneg %p146
        %s282 = sand.u32 %s136, 1
        %s283 = scalar_lea.sflag [#allocation6], %s282
        %s284 = sand.u32 %s136, 1
        %s285 = smul.addr %s284, 8
        %s286 = scalar_lea.vmem [#allocation9], %s285
        %p287 = pneg %p177
        %p288 = pneg %p174
        %s289 = sand.u32 %s164, 1
        %s290 = scalar_lea.sflag [#allocation11], %s289
        %s291 = sand.u32 %s164, 1
        %s292 = smul.addr %s291, 8
        %s293 = scalar_lea.vmem [#allocation10], %s292
        %s294 = sadd.s32 %s32, %s33
        %s295 = sadd.s32 %s32, %s33
        %p296 = scmp.lt.s32.totalorder %s31, 1
        %s297 = scalar_select %p296, %s31, 1
        %p298 = scmp.lt.s32.totalorder %s295, 0
        %s299 = scalar_select %p298, %s295, 0
        %s300 = sadd.s32 %s299, %s297
        %s301 = smul.addr %s300, 2
        %s302 = scalar_lea.vmem %s2, %s301
        %s303 = sadd.s32 %s32, %s33
        %p304 = scmp.eq.s32.totalorder %s33, 0
        // Predicated region
        $region41: #{tpu_custom_call.1} parent=31 // pred_check
          %p305 = pneg %p304
        $region42: #{tpu_custom_call.1} parent=31 // pred_check_branch
          %307 = sbr.rel (%p305) target = $region44
        $region43: #{tpu_custom_call.1} parent=31 // pred_region
          %308 = vst [vmem:[#allocation2] sm:$0x1] 0.0
          %309 = vst [vmem:[#allocation3] sm:$0x1] 0.0
        $region44: #{tpu_custom_call.1} parent=31 // pred_fallthru
          _
        %v310 = vld [vmem:[%s255] sm:$0x3]
        %s311 = scalar_lea.vmem %s255, 2 [#allocation8]
        %v312 = vld [vmem:[%s311] sm:$0x3]
        %s313 = scalar_lea.vmem %s255, 4 [#allocation8]
        %v314 = vld [vmem:[%s313] sm:$0x3]
        %s315 = scalar_lea.vmem %s255, 6 [#allocation8]
        %v316 = vld [vmem:[%s315] sm:$0x3]
        %v317 = vld [vmem:[%s302] sm:$0x3]
        %v318 = vmax.f32 %v310, %v312
        %v319 = vmax.f32 %v318, %v314
        %v320 = vmax.f32 %v319, %v316
        %v321 = vsub.f32 %v310, %v320
        %v322 = vmul.f32 %v321, 1.442695
        %v323 = vpow.pop %v322
        %v324 = vsub.f32 %v312, %v320
        %v325 = vmul.f32 %v324, 1.442695
        %v326 = vpow.pop %v325
        %v327 = vadd.f32 %v323, %v326
        %v328 = vsub.f32 %v314, %v320
        %v329 = vmul.f32 %v328, 1.442695
        %v330 = vpow.pop %v329
        %v331 = vadd.f32 %v327, %v330
        %v332 = vsub.f32 %v316, %v320
        %v333 = vmul.f32 %v332, 1.442695
        %v334 = vpow.pop %v333
        %v335 = vadd.f32 %v331, %v334
        %v336 = vlog2.pop %v335
        %v337 = vmul.f32 %v336, 0.6931472
        %v338 = vadd.f32 %v337, %v320
        %vm339 = vcmp.eq.s32.totalorder %v317, 0
        %v340 = vsel %vm339, %v310, 0.0
        %s341 = sld [smem:[#allocation4]]
        %v342 = vstv %s341
        %v343 = vsel %vm339, %v342, 0.0
        %vm344 = vcmp.eq.s32.totalorder %v317, 1
        %v345 = vsel %vm344, %v312, %v340
        %s346 = sld [smem:[#allocation4 + $0x1]]
        %v347 = vstv %s346
        %v348 = vsel %vm344, %v347, %v343
        %vm349 = vcmp.eq.s32.totalorder %v317, 2
        %v350 = vsel %vm349, %v314, %v345
        %s351 = sld [smem:[#allocation4 + $0x2]]
        %v352 = vstv %s351
        %v353 = vsel %vm349, %v352, %v348
        %vm354 = vcmp.eq.s32.totalorder %v317, 3
        %v355 = vsel %vm354, %v316, %v350
        %s356 = sld [smem:[#allocation4 + $0x3]]
        %v357 = vstv %s356
        %v358 = vsel %vm354, %v357, %v353
        %v359 = vld [vmem:[#allocation2] sm:$0x1]
        %v360 = vsub.f32 %v338, %v355
        %v361 = vmul.f32 %v358, %v360
        %vm362 = vcmask 1041408
        %v363 = vsel %vm362, %v361, 0.0
        %v364 = vrot.slane %v363, 4
        %v365 = vadd.f32 %v363, %v364
        %v366 = vrot.slane %v365, 2
        %v367 = vadd.f32 %v365, %v366
        %v368 = vrot.slane %v367, 1
        %v369 = vadd.f32 %v367, %v368
        %v370 = vadd.f32 %v359, %v369
        %371 = vst [vmem:[#allocation2] sm:$0x1] %v370
        %v372 = vld [vmem:[#allocation3] sm:$0x1]
        %v373 = vsel %vm362, %v358, 0.0
        %v374 = vrot.slane %v373, 4
        %v375 = vadd.f32 %v373, %v374
        %v376 = vrot.slane %v375, 2
        %v377 = vadd.f32 %v375, %v376
        %v378 = vrot.slane %v377, 1
        %v379 = vadd.f32 %v377, %v378
        %v380 = vadd.f32 %v372, %v379
        %381 = vst [vmem:[#allocation3] sm:$0x1] %v380
        // Predicated region
        $region45: #{tpu_custom_call.1} parent=31 // pred_check
          %p382 = pneg %p304
        $region46: #{tpu_custom_call.1} parent=31 // pred_check_branch
          %384 = sbr.rel (%p382) target = $region48
        $region47: #{tpu_custom_call.1} parent=31 // pred_region
          %v385 = vld [vmem:[#allocation2] sm:$0x1]
          %vm386 = vcmask 1040384
          %v387 = vsel %vm386, %v385, 0.0
          %388 = vadd.xlane.f32.xlu0 %v387
          %v389 = vpop.xlane.xlu0 %388
          %v390 = vrot.slane %v389, 4
          %v391 = vadd.f32 %v389, %v390
          %v392 = vrot.slane %v391, 2
          %v393 = vadd.f32 %v391, %v392
          %v394 = vrot.slane %v393, 1
          %v395 = vadd.f32 %v393, %v394
          %s396 = vtos %v395
          %v397 = vld [vmem:[#allocation3] sm:$0x1]
          %v398 = vsel %vm386, %v397, 0.0
          %399 = vadd.xlane.f32.xlu0 %v398
          %v400 = vpop.xlane.xlu0 %399
          %v401 = vrot.slane %v400, 4
          %v402 = vadd.f32 %v400, %v401
          %v403 = vrot.slane %v402, 2
          %v404 = vadd.f32 %v402, %v403
          %v405 = vrot.slane %v404, 1
          %v406 = vadd.f32 %v404, %v405
          %s407 = vtos %v406
          %v408 = vstv %s396
          %409 = vst [vmem:[%s286] sm:$0xff] %v408
          %v410 = vstv %s407
          %411 = vst [vmem:[%s293] sm:$0xff] %v410
        $region48: #{tpu_custom_call.1} parent=31 // pred_fallthru
          _
        %s412 = sand.u32 %s136, 1
        %s413 = scalar_lea.sflag [#allocation6], %s412
        %s414 = sand.u32 %s136, 1
        %s415 = smul.addr %s414, 8
        %s416 = scalar_lea.vmem [#allocation9], %s415
        %s417 = sand.u32 %s164, 1
        %s418 = scalar_lea.sflag [#allocation11], %s417
        %s419 = sand.u32 %s164, 1
        %s420 = smul.addr %s419, 8
        %s421 = scalar_lea.vmem [#allocation10], %s420
        // Predicated region
        $region49: #{tpu_custom_call.1} parent=31 // pred_check
          %p422 = pneg %p146
        $region50: #{tpu_custom_call.1} parent=31 // pred_check_branch
          %424 = sbr.rel (%p422) target = $region52
        $region51: #{tpu_custom_call.1} parent=31 // pred_region
          %s426 = ssub.s32 128, 128
          %427 = vsyncadd %s413, %s426
          %s428 = sadd.s32 %s32, %s31
          %s429 = smul.addr %s428, 128
          %s430 = scalar_lea.hbm %s3, %s429
          %s432 = sshll.u32 %s416, 4
          %s433 = int_to_ptr.vmem [resolvable:$true] %s432
          %435 = dma.vmem_to_hbm [thread:$0]  %s433, 128, %s430, %s413
        $region52: #{tpu_custom_call.1} parent=31 // pred_fallthru
          _
        // Predicated region
        $region53: #{tpu_custom_call.1} parent=31 // pred_check
          %p436 = pneg %p174
        $region54: #{tpu_custom_call.1} parent=31 // pred_check_branch
          %438 = sbr.rel (%p436) target = $region56
        $region55: #{tpu_custom_call.1} parent=31 // pred_region
          %s440 = ssub.s32 128, 128
          %441 = vsyncadd %s418, %s440
          %s442 = sadd.s32 %s32, %s31
          %s443 = smul.addr %s442, 128
          %s444 = scalar_lea.hbm %s4, %s443
          %s446 = sshll.u32 %s421, 4
          %s447 = int_to_ptr.vmem [resolvable:$true] %s446
          %449 = dma.vmem_to_hbm [thread:$0]  %s447, 128, %s444, %s418
        $region56: #{tpu_custom_call.1} parent=31 // pred_fallthru
          _
      $region32: #{tpu_custom_call.1} parent=5 // pred_fallthru
        _
      %p450 = scmp.le.s32.totalorder 2, %s21
      // Predicated region
      $region57: #{tpu_custom_call.1} parent=5 // pred_check
        %p451 = pneg %p450
      $region58: #{tpu_custom_call.1} parent=5 // pred_check_branch
        %453 = sbr.rel (%p451) target = $region60
      $region59: #{tpu_custom_call.1} parent=5 // pred_region
        %s454 = ssub.s32 %s21, 2
        // Predicated region
        $region61: #{tpu_custom_call.1} parent=59 // pred_check
          %p455 = pneg %p152
        $region62: #{tpu_custom_call.1} parent=59 // pred_check_branch
          %457 = sbr.rel (%p455) target = $region64
        $region63: #{tpu_custom_call.1} parent=59 // pred_region
          %s458 = sand.u32 %s137, 1
          %s459 = scalar_lea.sflag [#allocation6], %s458
          %s460 = sand.u32 %s137, 1
          %s461 = smul.addr %s460, 8
          %s462 = scalar_lea.vmem [#allocation9], %s461
          %463 = dma.done %s459, 128
        $region64: #{tpu_custom_call.1} parent=59 // pred_fallthru
          _
        // Predicated region
        $region65: #{tpu_custom_call.1} parent=59 // pred_check
          %p464 = pneg %p180
        $region66: #{tpu_custom_call.1} parent=59 // pred_check_branch
          %466 = sbr.rel (%p464) target = $region68
        $region67: #{tpu_custom_call.1} parent=59 // pred_region
          %s467 = sand.u32 %s165, 1
          %s468 = scalar_lea.sflag [#allocation11], %s467
          %s469 = sand.u32 %s165, 1
          %s470 = smul.addr %s469, 8
          %s471 = scalar_lea.vmem [#allocation10], %s470
          %472 = dma.done %s468, 128
        $region68: #{tpu_custom_call.1} parent=59 // pred_fallthru
          _
      $region60: #{tpu_custom_call.1} parent=5 // pred_fallthru
        _
    $region6: #{tpu_custom_call.1} parent=1 // loop_footer
      %s25 = sadd.s32 1, %s21
    $region7: #{tpu_custom_call.1} parent=1 // loop_footer_branch
      %20 = sbr.rel target = $region3
    $region8: #{tpu_custom_call.1} parent=1 // loop_exit
      _
    %473 = vsyncpa [#allocation5], 1
    %s474 = scalar_lea.sflag [#allocation5], 1
    %475 = vsyncpa %s474, 1
    %476 = vsyncpa [#allocation6], 1
    %s477 = scalar_lea.sflag [#allocation6], 1
    %478 = vsyncpa %s477, 1
    %479 = vsyncpa [#allocation11], 1
    %s480 = scalar_lea.sflag [#allocation11], 1
    %481 = vsyncpa %s480, 1
    %482 = vsyncpa [#allocation7], 1
    %s483 = scalar_lea.sflag [#allocation7], 1
    %484 = vsyncpa %s483, 1

</llo_original>
